<compile_context>
chip_gen: v5e
topology: v5e:2x2
jax: 0.10.0
libtpu: 0.0.40
codegen_flags: <defaults>
</compile_context>

<pallas_src>
import functools

import jax
import jax.numpy as jnp
import numpy as np
from jax import lax
from jax.experimental import pallas as pl
from jax.experimental.pallas import tpu as pltpu


def _round_up(x, m):
    return (x + m - 1) // m * m


def fvib_kernel(eps_ref, h_ref, L_ref, logits0_ref, probs_ref, *,
                eps_coef, inv_n, n_classes, n_samples, ragged):
    # eps_ref: (S_blk, B_tile, D) f32   h_ref: (B_tile, D) f32 (pre-scaled)
    # L_ref:   (D, C_pad) bf16 (pre-scaled)
    # logits0_ref / probs_ref: (B_tile, C_pad)
    s_blk, b_tile, d = eps_ref.shape
    c_pad = L_ref.shape[1]

    h = h_ref[...]
    eps = eps_ref[...]

    # Scales were folded into h (wrapper) and L (wrapper); normally eps_coef==1.
    if eps_coef == 1.0:
        zs = h[None, :, :] + eps
    else:
        zs = h[None, :, :] + eps_coef * eps
    # Fold samples into the MXU M dimension; feed the MXU bf16 operands.
    zs = zs.reshape(s_blk * b_tile, d).astype(jnp.bfloat16)

    logits = jnp.dot(zs, L_ref[...], preferred_element_type=jnp.float32)

    @pl.when(pl.program_id(1) == 0)
    def _():
        # Sample 0 is the first B_tile rows of the folded slab.
        logits0_ref[...] = logits[:b_tile, :].astype(logits0_ref.dtype)
        probs_ref[...] = jnp.zeros_like(probs_ref)

    # Padded class columns of L are zero -> their logits are exactly 0, so the
    # row max over all columns is >= the real max (exp stays stable).  Mask
    # them with a select on e instead of an additive -1e30 pass over logits.
    col = lax.broadcasted_iota(jnp.int32, (1, c_pad), 1)
    col_valid = col < n_classes

    m = jnp.max(logits, axis=-1, keepdims=True)
    e = jnp.where(col_valid, jnp.exp(logits - m), 0.0)
    denom = jnp.sum(e, axis=-1, keepdims=True)
    r = pl.reciprocal(denom, approx=True) * inv_n      # fold 1/n_samples (EUP)
    p = (e * r).reshape(s_blk, b_tile, c_pad)

    if ragged:
        # Tail sample block: zero out rows belonging to padded samples.
        srow = lax.broadcasted_iota(jnp.int32, (s_blk, 1, 1), 0)
        valid = (pl.program_id(1) * s_blk + srow) < n_samples
        p = jnp.where(valid, p, 0.0)

    probs_ref[...] += p.sum(axis=0).astype(probs_ref.dtype)


def fvib_forward(h_x, K, epsilon, *, beta, conf_after_ts=0.9995):
    B, D = h_x.shape
    assert K.shape[0] == D
    C = K.shape[1] + 1
    n_samples = epsilon.shape[0]

    if conf_after_ts is None:
        temperature = 1.0
    else:
        d = D + 1
        temperature = float(
            d / (np.log(d - 1) + np.log(conf_after_ts / (1.0 - conf_after_ts))))

    sqrt_1mb = float((1.0 - beta) ** 0.5)
    inv_temp = 1.0 / temperature
    c_h = sqrt_1mb * sqrt_1mb * inv_temp                 # (1-beta)/temperature
    c_eps = float(beta ** 0.5) * sqrt_1mb * inv_temp     # sqrt(beta)*sqrt(1-beta)/T

    # mean / var are trivial broadcasts -> plain XLA, keep out of the kernel.
    mean = sqrt_1mb * h_x
    var = jnp.full_like(h_x, beta)

    # Fold scales: (c_h*h + c_eps*eps) @ L == (h*(c_h/c_eps) + eps) @ (c_eps*L)
    if c_eps != 0.0:
        h_pre = (c_h / c_eps) * h_x
        eps_coef = 1.0
        L_scale = c_eps
    else:  # beta == 0: eps contributes nothing
        h_pre = c_h * h_x
        eps_coef = 0.0
        L_scale = 1.0

    # ---- pad ONLY the tiny class dim (lane-dense stores) -------------------
    C_pad = _round_up(C, 128)
    # L = [K | 0], zero-padded to C_pad columns, pre-scaled, bf16 for the MXU.
    L_p = (L_scale * jnp.pad(K, ((0, 0), (0, C_pad - (C - 1))))
           ).astype(jnp.bfloat16)

    # ---- batch tiling (prefer >=2 blocks on the parallel axis for v7x) -----
    if B % 8 == 0:
        cands = [t for t in range(8, min(B, 256) + 1, 8) if B % t == 0]
        two = [t for t in cands if B // t >= 2]
        B_tile = max(two) if two else max(cands)
    else:
        # Full batch as one block (full-array dim is exempt from the 8-rule).
        B_tile = B
    grid_b = pl.cdiv(B, B_tile)

    # ---- sample blocking: fold samples into M, bounded by VMEM -------------
    # per folded-M row: eps dbl-buf (8D) + zs f32/bf16 (6D) + logits/e/p (12*C_pad)
    per_row_bytes = 14 * D + 12 * C_pad
    s_by_vmem = max(1, (12 * 1024 * 1024) // (B_tile * per_row_bytes))
    s_by_m = max(1, 1024 // B_tile) if B_tile <= 1024 else 1
    S_blk = max(1, min(n_samples, s_by_m, s_by_vmem))
    if n_samples % S_blk != 0:
        # prefer a nearby exact divisor to avoid the ragged-tail mask
        for cand in range(S_blk, max(1, (3 * S_blk) // 4) - 1, -1):
            if n_samples % cand == 0:
                S_blk = cand
                break
    ragged = (n_samples % S_blk) != 0
    grid_s = pl.cdiv(n_samples, S_blk)

    # ---- explicit VMEM budget (v5e 16 MiB default / v7x 64 MiB physical) ---
    vmem_need = (
        2 * S_blk * B_tile * D * 4            # eps double buffer
        + 2 * B_tile * D * 4                  # h double buffer
        + 2 * D * C_pad * 2                   # L (bf16) double buffer
        + 2 * 2 * B_tile * C_pad * 4          # logits0 + probs output blocks
        + S_blk * B_tile * (6 * D + 12 * C_pad)  # zs f32+bf16, logits/e/p f32
    )
    vmem_limit = int(min(64 * 1024 * 1024,
                         max(32 * 1024 * 1024, 2 * vmem_need)))

    kernel = functools.partial(
        fvib_kernel, eps_coef=eps_coef, inv_n=1.0 / n_samples,
        n_classes=C, n_samples=n_samples, ragged=ragged)

    cost = pl.CostEstimate(
        flops=2 * n_samples * B * D * C_pad,
        transcendentals=n_samples * B * C_pad,
        bytes_accessed=int(4 * epsilon.size + 4 * h_pre.size + 2 * L_p.size
                           + 8 * B * C_pad),
    )

    logits0_p, probs_p = pl.pallas_call(
        kernel,
        out_shape=(
            jax.ShapeDtypeStruct((B, C_pad), h_x.dtype),    # logits[0]
            jax.ShapeDtypeStruct((B, C_pad), jnp.float32),  # probs accumulator
        ),
        grid_spec=pltpu.PrefetchScalarGridSpec(
            num_scalar_prefetch=0,
            grid=(grid_b, grid_s),
            in_specs=[
                # eps / h consumed UNPADDED: last block dim == full D.
                pl.BlockSpec((S_blk, B_tile, D), lambda b, s: (s, b, 0)),
                pl.BlockSpec((B_tile, D), lambda b, s: (b, 0)),
                pl.BlockSpec((D, C_pad), lambda b, s: (0, 0)),
            ],
            out_specs=[
                pl.BlockSpec((B_tile, C_pad), lambda b, s: (b, 0)),
                pl.BlockSpec((B_tile, C_pad), lambda b, s: (b, 0)),
            ],
        ),
        compiler_params=pltpu.CompilerParams(
            dimension_semantics=("parallel", "arbitrary"),
            vmem_limit_bytes=vmem_limit),
        cost_estimate=cost,
    )(epsilon, h_pre, L_p)

    return logits0_p[:, :C], mean, var, probs_p[:, :C]


def fvib_reference(h_x, K, epsilon, *, beta, conf_after_ts=0.9995):
    """Pure-JAX reference mirroring the PyTorch forward."""
    D = K.shape[0]
    L = jnp.concatenate([K, jnp.zeros((D, 1), dtype=K.dtype)], axis=1)
    if conf_after_ts is None:
        temperature = 1.0
    else:
        d = D + 1
        temperature = float(
            d / (np.log(d - 1) + np.log(conf_after_ts / (1.0 - conf_after_ts))))
    var = jnp.ones_like(h_x) * beta
    mean = (1.0 - beta) ** 0.5 * h_x
    z = mean[None] + epsilon * jnp.sqrt(var)[None]
    logits = (1.0 - beta) ** 0.5 * jnp.einsum('sbd,dc->sbc', z, L)
    logits = logits / temperature
    probs = jnp.mean(jax.nn.softmax(logits, axis=2), axis=0)
    return logits[0], mean, var, probs


if __name__ == "__main__":
    # Small deterministic setup: D = latent dim, C = num classes, B = batch.
    B, D, C = 8, 32, 8
    n_samples = 12
    beta = 0.1
    conf_after_ts = 0.9995

    key = jax.random.PRNGKey(0)
    k1, k2, k3 = jax.random.split(key, 3)
    # K matrix (as produced by calc_K in the original code): shape (D, C-1)
    K = jax.random.normal(k1, (D, C - 1), dtype=jnp.float32)
    h_x = jax.random.normal(k2, (B, D), dtype=jnp.float32)
    # TODO(synk): torch.randn inside forward() is replaced by explicit epsilon input.
    epsilon = jax.random.normal(k3, (n_samples, B, D), dtype=jnp.float32)

    outs = fvib_forward(h_x, K, epsilon, beta=beta, conf_after_ts=conf_after_ts)
    outs = jax.block_until_ready(outs)

    refs = fvib_reference(h_x, K, epsilon, beta=beta,
                          conf_after_ts=conf_after_ts)

    # logits[0] now uses bf16 MXU inputs (f32 accumulate) -> relaxed tolerance.
    np.testing.assert_allclose(np.asarray(outs[0]), np.asarray(refs[0]),
                               rtol=2e-2, atol=2e-2)
    # mean / var: exact math path -> tight tolerance.
    for o, r in zip(outs[1:3], refs[1:3]):
        np.testing.assert_allclose(np.asarray(o), np.asarray(r),
                                   rtol=1e-5, atol=1e-5)
    # probs: bf16 matmul inputs + pl.reciprocal(approx=True).
    np.testing.assert_allclose(np.asarray(outs[3]), np.asarray(refs[3]),
                               rtol=3e-2, atol=3e-3)

    print("KERNEL_OK")
</pallas_src>

<mosaic_0001>
module attributes {stable_mosaic.version = 11 : i64} {
  func.func @fvib_kernel(%arg0: i32, %arg1: i32, %arg2: memref<12x8x32xf32, #tpu.memory_space<vmem>>, %arg3: memref<8x32xf32, #tpu.memory_space<vmem>>, %arg4: memref<32x128xbf16, #tpu.memory_space<vmem>>, %arg5: memref<8x128xf32, #tpu.memory_space<vmem>>, %arg6: memref<8x128xf32, #tpu.memory_space<vmem>>) attributes {dimension_semantics = [#tpu.dimension_semantics<parallel>, #tpu.dimension_semantics<arbitrary>], iteration_bounds = array<i64: 1, 1>, scalar_prefetch = 0 : i64, scratch_operands = 0 : i64, tpu.core_type = #tpu.core_type<tc>, window_params = [{transform_indices = @transform_0, window_bounds = array<i64: 12, 8, 32>}, {transform_indices = @transform_1, window_bounds = array<i64: 8, 32>}, {pipeline_mode = #tpu.pipeline_mode<synchronous>, transform_indices = @transform_2, window_bounds = array<i64: 32, 128>}, {transform_indices = @transform_3, window_bounds = array<i64: 8, 128>}, {transform_indices = @transform_4, window_bounds = array<i64: 8, 128>}]} {
    %c0 = arith.constant 0 : index
    %c0_0 = arith.constant 0 : index
    %0 = vector.load %arg3[%c0, %c0_0] : memref<8x32xf32, #tpu.memory_space<vmem>>, vector<8x32xf32>
    %c0_1 = arith.constant 0 : index
    %c0_2 = arith.constant 0 : index
    %c0_3 = arith.constant 0 : index
    %1 = vector.load %arg2[%c0_1, %c0_2, %c0_3] : memref<12x8x32xf32, #tpu.memory_space<vmem>>, vector<12x8x32xf32>
    %2 = vector.shape_cast %0 : vector<8x32xf32> to vector<1x8x32xf32>
    %3 = vector.broadcast %2 : vector<1x8x32xf32> to vector<12x8x32xf32>
    %4 = arith.addf %3, %1 : vector<12x8x32xf32>
    %5 = vector.shape_cast %4 : vector<12x8x32xf32> to vector<96x32xf32>
    %6 = arith.truncf %5 : vector<96x32xf32> to vector<96x32xbf16>
    %c0_4 = arith.constant 0 : index
    %c0_5 = arith.constant 0 : index
    %7 = vector.load %arg4[%c0_4, %c0_5] : memref<32x128xbf16, #tpu.memory_space<vmem>>, vector<32x128xbf16>
    %cst = arith.constant dense<0.000000e+00> : vector<96x128xf32>
    %8 = tpu.matmul %6, %7, %cst {dimension_numbers = #tpu.dot_dimension_numbers<[1], [0], [0], [1], [0, 0, 1, 1], [], []>} : vector<96x32xbf16>, vector<32x128xbf16>, vector<96x128xf32> -> vector<96x128xf32>
    %c0_i32 = arith.constant 0 : i32
    %9 = arith.cmpi eq, %arg1, %c0_i32 : i32
    %10 = arith.extui %9 : i1 to i32
    %c0_i32_6 = arith.constant 0 : i32
    %11 = arith.cmpi ne, %10, %c0_i32_6 : i32
    scf.if %11 {
      %36 = vector.extract_strided_slice %8 {offsets = [0, 0], sizes = [8, 128], strides = [1, 1]} : vector<96x128xf32> to vector<8x128xf32>
      %c0_16 = arith.constant 0 : index
      %c0_17 = arith.constant 0 : index
      %37 = vector.load %arg5[%c0_16, %c0_17] : memref<8x128xf32, #tpu.memory_space<vmem>>, vector<8x128xf32>
      tpu.vector_store %arg5[%c0_16, %c0_17], %36 {strides = array<i32>} : memref<8x128xf32, #tpu.memory_space<vmem>>, vector<8x128xf32>,
      %cst_18 = arith.constant 0.000000e+00 : f32
      %38 = vector.broadcast %cst_18 : f32 to vector<8x128xf32>
      %c0_19 = arith.constant 0 : index
      %c0_20 = arith.constant 0 : index
      %39 = vector.load %arg6[%c0_19, %c0_20] : memref<8x128xf32, #tpu.memory_space<vmem>>, vector<8x128xf32>
      tpu.vector_store %arg6[%c0_19, %c0_20], %38 {strides = array<i32>} : memref<8x128xf32, #tpu.memory_space<vmem>>, vector<8x128xf32>,
    } else {
    }
    %12 = tpu.iota {dimensions = array<i32: 1>} : vector<1x128xi32>
    %c8_i32 = arith.constant 8 : i32
    %13 = vector.broadcast %c8_i32 : i32 to vector<1x128xi32>
    %14 = arith.cmpi slt, %12, %13 : vector<1x128xi32>
    %cst_7 = arith.constant dense<0xFF800000> : vector<96xf32>
    %15 = vector.multi_reduction <maximumf>, %8, %cst_7 [1] : vector<96x128xf32> to vector<96xf32>
    %16 = vector.shape_cast %15 : vector<96xf32> to vector<96x1xf32>
    %17 = vector.broadcast %16 : vector<96x1xf32> to vector<96x128xf32>
    %18 = arith.subf %8, %17 : vector<96x128xf32>
    %19 = math.exp %18 : vector<96x128xf32>
    %cst_8 = arith.constant 0.000000e+00 : f32
    %20 = vector.shape_cast %14 : vector<1x128xi1> to vector<1x128xi1>
    %21 = vector.broadcast %20 : vector<1x128xi1> to vector<96x128xi1>
    %22 = vector.broadcast %cst_8 : f32 to vector<96x128xf32>
    %23 = arith.select %21, %19, %22 : vector<96x128xi1>, vector<96x128xf32>
    %cst_9 = arith.constant dense<0.000000e+00> : vector<96xf32>
    %24 = vector.multi_reduction <add>, %23, %cst_9 [1] : vector<96x128xf32> to vector<96xf32>
    %25 = vector.shape_cast %24 : vector<96xf32> to vector<96x1xf32>
    %26 = tpu.reciprocal %25 {approx = true} : vector<96x1xf32> -> vector<96x1xf32>
    %cst_10 = arith.constant 0.0833333358 : f32
    %27 = vector.broadcast %cst_10 : f32 to vector<96x1xf32>
    %28 = arith.mulf %26, %27 : vector<96x1xf32>
    %29 = vector.broadcast %28 : vector<96x1xf32> to vector<96x128xf32>
    %30 = arith.mulf %23, %29 : vector<96x128xf32>
    %31 = vector.shape_cast %30 : vector<96x128xf32> to vector<12x8x128xf32>
    %c0_11 = arith.constant 0 : index
    %c0_12 = arith.constant 0 : index
    %32 = vector.load %arg6[%c0_11, %c0_12] : memref<8x128xf32, #tpu.memory_space<vmem>>, vector<8x128xf32>
    %cst_13 = arith.constant dense<0.000000e+00> : vector<8x128xf32>
    %33 = vector.multi_reduction <add>, %31, %cst_13 [0] : vector<12x8x128xf32> to vector<8x128xf32>
    %34 = arith.addf %32, %33 : vector<8x128xf32>
    %c0_14 = arith.constant 0 : index
    %c0_15 = arith.constant 0 : index
    %35 = vector.load %arg6[%c0_14, %c0_15] : memref<8x128xf32, #tpu.memory_space<vmem>>, vector<8x128xf32>
    tpu.vector_store %arg6[%c0_14, %c0_15], %34 {strides = array<i32>} : memref<8x128xf32, #tpu.memory_space<vmem>>, vector<8x128xf32>,
    return
  }
  func.func @transform_0(%arg0: i32, %arg1: i32) -> (i32, i32, i32) {
    %c0_i32 = arith.constant 0 : i32
    %c0_i32_0 = arith.constant 0 : i32
    return %arg1, %arg0, %c0_i32 : i32, i32, i32
  }
  func.func @transform_1(%arg0: i32, %arg1: i32) -> (i32, i32) {
    %c0_i32 = arith.constant 0 : i32
    %c0_i32_0 = arith.constant 0 : i32
    return %arg0, %c0_i32 : i32, i32
  }
  func.func @transform_2(%arg0: i32, %arg1: i32) -> (i32, i32) {
    %c0_i32 = arith.constant 0 : i32
    %c0_i32_0 = arith.constant 0 : i32
    %c0_i32_1 = arith.constant 0 : i32
    return %c0_i32, %c0_i32_0 : i32, i32
  }
  func.func @transform_3(%arg0: i32, %arg1: i32) -> (i32, i32) {
    %c0_i32 = arith.constant 0 : i32
    %c0_i32_0 = arith.constant 0 : i32
    return %arg0, %c0_i32 : i32, i32
  }
  func.func @transform_4(%arg0: i32, %arg1: i32) -> (i32, i32) {
    %c0_i32 = arith.constant 0 : i32
    %c0_i32_0 = arith.constant 0 : i32
    return %arg0, %c0_i32 : i32, i32
  }
}

</mosaic_0001>

<llo_original>
// kernel: tpu_custom_call.1
$region0: #{tpu_custom_call.1}
  #allocation0 [shape = 'u32[]', space=smem, size = 0x4, offset = 0x4, fixed_abs, tag = 'smem constant byte address 0x4 - core index']
  #allocation1 [shape = 'u32[72,128]{1,0:T(1,128)}', space=vmem, size = 0x9000, scoped, tag = 'internal scratch']
  %s0 = inlined_call_operand.hbm [shape: f32[12,8,32], index: 0, kind: input, shape index: {}]
  %s1 = inlined_call_operand.hbm [shape: f32[8,32], index: 1, kind: input, shape index: {}]
  %s2 = inlined_call_operand.hbm [shape: bf16[32,128], index: 2, kind: input, shape index: {}]
  %s3 = inlined_call_operand.hbm [shape: f32[8,128], index: 3, kind: output, shape index: {0}]
  %s4 = inlined_call_operand.hbm [shape: f32[8,128], index: 4, kind: output, shape index: {1}]
  %5 = xla_tuple %s3, %s4
  %s6 = sld [smem:[#allocation0]]
  $region46: #{tpu_custom_call.1} parent=0
    _
  %s8 = ssub.s32 1, %s6
  %s9 = scalar_select 0, %s8, %s6
  $region1: #{tpu_custom_call.1} parent=0
    #allocation2 [shape = 'u8[49152]{0}', space=vmem, size = 0xc000, scoped, tag = 'input window, operand 0, single buffered']
    #allocation3 [shape = 's32[1]{0}', space=sflag, size = 0x4, scoped, tag = 'scoped memory for tpu_custom_call.1']
    #allocation4 [shape = 's32[1]{0}', space=sflag, size = 0x4, scoped, tag = 'scoped memory for tpu_custom_call.1']
    #allocation5 [shape = 'u8[4096]{0}', space=vmem, size = 0x1000, scoped, tag = 'input window, operand 1, single buffered']
    #allocation6 [shape = 's32[1]{0}', space=sflag, size = 0x4, scoped, tag = 'scoped memory for tpu_custom_call.1']
    #allocation7 [shape = 'u8[8192]{0}', space=vmem, size = 0x2000, scoped, tag = 'input window, operand 2, single buffered']
    #allocation8 [shape = 'u8[4096]{0}', space=vmem, size = 0x1000, scoped, tag = 'output window, operand 0, single buffered']
    #allocation9 [shape = 'u8[4096]{0}', space=vmem, size = 0x1000, scoped, tag = 'output window, operand 1, single buffered']
    #allocation10 [shape = 's32[1]{0}', space=sflag, size = 0x4, scoped, tag = 'scoped memory for tpu_custom_call.1']
    %10 = vsyncpa [#allocation3], 0
    %11 = vsyncpa [#allocation6], 0
    %12 = vsyncpa [#allocation4], 0
    %13 = vsyncpa [#allocation10], 0
    // Predicated region
    $region2: #{tpu_custom_call.1} parent=1 // pred_check
      _
    $region3: #{tpu_custom_call.1} parent=1 // pred_check_branch
      %15 = sbr.rel (0) target = $region5
    $region4: #{tpu_custom_call.1} parent=1 // pred_region
      %17 = vsyncadd [#allocation3], 0
      %s18 = sshll.u32 %s0, 4
      %s19 = int_to_ptr.hbm [resolvable:$true] %s18
      %s20 = sshll.u32 [#allocation2], 4
      %s21 = int_to_ptr.vmem [resolvable:$true] %s20
      %26 = dma.hbm_to_vmem [thread:$0]  %s19, 1536, %s21, [#allocation3], 128, 128, 8
    $region5: #{tpu_custom_call.1} parent=1 // pred_fallthru
      _
    // Predicated region
    $region6: #{tpu_custom_call.1} parent=1 // pred_check
      _
    $region7: #{tpu_custom_call.1} parent=1 // pred_check_branch
      %28 = sbr.rel (0) target = $region9
    $region8: #{tpu_custom_call.1} parent=1 // pred_region
      %30 = vsyncadd [#allocation6], 0
      %s32 = sshll.u32 %s1, 4
      %s33 = int_to_ptr.hbm [resolvable:$true] %s32
      %s34 = sshll.u32 [#allocation5], 4
      %s35 = int_to_ptr.vmem [resolvable:$true] %s34
      %37 = dma.hbm_to_vmem [thread:$0]  %s33, 128, %s35, [#allocation6]
    $region9: #{tpu_custom_call.1} parent=1 // pred_fallthru
      _
    // Predicated region
    $region10: #{tpu_custom_call.1} parent=1 // pred_check
      _
    $region11: #{tpu_custom_call.1} parent=1 // pred_check_branch
      %39 = sbr.rel (0) target = $region13
    $region12: #{tpu_custom_call.1} parent=1 // pred_region
      %41 = vsyncadd [#allocation6], 0
      %s42 = sshll.u32 %s2, 4
      %s43 = int_to_ptr.hbm [resolvable:$true] %s42
      %s44 = sshll.u32 [#allocation7], 4
      %s45 = int_to_ptr.vmem [resolvable:$true] %s44
      %50 = dma.hbm_to_vmem [thread:$0]  %s43, 256, %s45, [#allocation6], 64, 64, 4
    $region13: #{tpu_custom_call.1} parent=1 // pred_fallthru
      _
    // Predicated region
    $region14: #{tpu_custom_call.1} parent=1 // pred_check
      _
    $region15: #{tpu_custom_call.1} parent=1 // pred_check_branch
      %52 = sbr.rel (0) target = $region17
    $region16: #{tpu_custom_call.1} parent=1 // pred_region
      %54 = dma.done [#allocation3], 1536
    $region17: #{tpu_custom_call.1} parent=1 // pred_fallthru
      _
    // Predicated region
    $region18: #{tpu_custom_call.1} parent=1 // pred_check
      _
    $region19: #{tpu_custom_call.1} parent=1 // pred_check_branch
      %56 = sbr.rel (0) target = $region21
    $region20: #{tpu_custom_call.1} parent=1 // pred_region
      %58 = dma.done [#allocation6], 128
    $region21: #{tpu_custom_call.1} parent=1 // pred_fallthru
      _
    // Predicated region
    $region22: #{tpu_custom_call.1} parent=1 // pred_check
      _
    $region23: #{tpu_custom_call.1} parent=1 // pred_check_branch
      %60 = sbr.rel (0) target = $region25
    $region24: #{tpu_custom_call.1} parent=1 // pred_region
      %62 = dma.done [#allocation6], 256
    $region25: #{tpu_custom_call.1} parent=1 // pred_fallthru
      _
    %v64 = vld [vmem:[#allocation5] sm:$0xff]
    %v65 = vld [vmem:[#allocation2] sm:$0xff]
    %v66 = vld [vmem:[#allocation2 + $0x8] sm:$0xff]
    %v67 = vld [vmem:[#allocation2 + $0x10] sm:$0xff]
    %v68 = vld [vmem:[#allocation2 + $0x18] sm:$0xff]
    %v69 = vld [vmem:[#allocation2 + $0x20] sm:$0xff]
    %v70 = vld [vmem:[#allocation2 + $0x28] sm:$0xff]
    %v71 = vld [vmem:[#allocation2 + $0x30] sm:$0xff]
    %v72 = vld [vmem:[#allocation2 + $0x38] sm:$0xff]
    %v73 = vld [vmem:[#allocation2 + $0x40] sm:$0xff]
    %v74 = vld [vmem:[#allocation2 + $0x48] sm:$0xff]
    %v75 = vld [vmem:[#allocation2 + $0x50] sm:$0xff]
    %v76 = vld [vmem:[#allocation2 + $0x58] sm:$0xff]
    %v77 = vadd.f32 %v64, %v65
    %v78 = vadd.f32 %v64, %v66
    %v79 = vadd.f32 %v64, %v67
    %v80 = vadd.f32 %v64, %v68
    %v81 = vadd.f32 %v64, %v69
    %v82 = vadd.f32 %v64, %v70
    %v83 = vadd.f32 %v64, %v71
    %v84 = vadd.f32 %v64, %v72
    %v85 = vadd.f32 %v64, %v73
    %v86 = vadd.f32 %v64, %v74
    %v87 = vadd.f32 %v64, %v75
    %v88 = vadd.f32 %v64, %v76
    %v89 = vpack.c.bf16 %v78, %v77
    %v90 = vpack.c.bf16 %v80, %v79
    %v91 = vpack.c.bf16 %v82, %v81
    %v92 = vpack.c.bf16 %v84, %v83
    %v93 = vpack.c.bf16 %v86, %v85
    %v94 = vpack.c.bf16 %v88, %v87
    %v95 = vld [vmem:[#allocation7] sm:$0xf]
    %v96 = vld [vmem:[#allocation7 + $0x4] sm:$0xf]
    %v97 = vld [vmem:[#allocation7 + $0x8] sm:$0xf]
    %v98 = vld [vmem:[#allocation7 + $0xc] sm:$0xf]
    %v103 = vunpack.c.l.b16 %v95
    %v104 = vunpack.c.l.b16 %v96
    %v105 = vunpack.c.l.b16 %v97
    %v106 = vunpack.c.l.b16 %v98
    %v107 = vpack.c.b16 %v104, %v103
    %v108 = vpack.c.b16 %v106, %v105
    %vm111 = vcmask 261120
    %v113 = vsel %vm111, %v89, 0
    %v116 = vsel %vm111, %v90, 0
    %v119 = vsel %vm111, %v91, 0
    %v122 = vsel %vm111, %v92, 0
    %v125 = vsel %vm111, %v93, 0
    %v128 = vsel %vm111, %v94, 0
    %130 = vmatpush.bf16.msra.mxu0 0
    %131 = vmatpush.bf16.msra.mxu0 0
    %132 = vmatpush.bf16.msra.mxu0 0
    %133 = vmatpush.bf16.msra.mxu0 0
    %134 = vmatpush.bf16.msra.mxu0 0
    %135 = vmatpush.bf16.msra.mxu0 0
    %136 = vmatpush.bf16.msra.mxu0 %v108
    %137 = vmatpush.bf16.msra.mxu0 %v107
    %138 = vmatmul.bf16.gmra.mxu0 %v113
    %v139 = vpop.f32.mrf.mxu0
    %v140 = vadd.f32 0.0, %v139
    %v141 = vpop.f32.mrf.mxu0
    %v142 = vadd.f32 0.0, %v141
    %143 = vmatmul.bf16.gmra.mxu0 %v116
    %v144 = vpop.f32.mrf.mxu0
    %v145 = vadd.f32 0.0, %v144
    %v146 = vpop.f32.mrf.mxu0
    %v147 = vadd.f32 0.0, %v146
    %148 = vmatmul.bf16.gmra.mxu0 %v119
    %v149 = vpop.f32.mrf.mxu0
    %v150 = vadd.f32 0.0, %v149
    %v151 = vpop.f32.mrf.mxu0
    %v152 = vadd.f32 0.0, %v151
    %153 = vmatmul.bf16.gmra.mxu0 %v122
    %v154 = vpop.f32.mrf.mxu0
    %v155 = vadd.f32 0.0, %v154
    %v156 = vpop.f32.mrf.mxu0
    %v157 = vadd.f32 0.0, %v156
    %158 = vmatmul.bf16.gmra.mxu0 %v125
    %v159 = vpop.f32.mrf.mxu0
    %v160 = vadd.f32 0.0, %v159
    %v161 = vpop.f32.mrf.mxu0
    %v162 = vadd.f32 0.0, %v161
    %163 = vmatmul.bf16.gmra.mxu0 %v128
    %v164 = vpop.f32.mrf.mxu0
    %v165 = vadd.f32 0.0, %v164
    %v166 = vpop.f32.mrf.mxu0
    %v167 = vadd.f32 0.0, %v166
    %168 = vdwg.mxu0
    %p169 = scmp.eq.s32.totalorder 0, 0
    // Predicated region
    $region26: #{tpu_custom_call.1} parent=1 // pred_check
      %p170 = pneg %p169
    $region27: #{tpu_custom_call.1} parent=1 // pred_check_branch
      %172 = sbr.rel (%p170) target = $region29
    $region28: #{tpu_custom_call.1} parent=1 // pred_region
      %173 = vst [vmem:[#allocation8] sm:$0xff] %v140
      %174 = vst [vmem:[#allocation9] sm:$0xff] 0.0
    $region29: #{tpu_custom_call.1} parent=1 // pred_fallthru
      _
    %v175 = vlaneseq
    %v176 = vand.u32 %v175, 127
    %vm177 = vcmp.lt.s32.totalorder %v176, 8
    %178 = vmax.xlane.f32.xlu0 %v140
    %v179 = vpop.xlane.xlu0 %178
    %180 = vmax.xlane.f32.xlu0 %v142
    %v181 = vpop.xlane.xlu0 %180
    %182 = vmax.xlane.f32.xlu0 %v145
    %v183 = vpop.xlane.xlu0 %182
    %184 = vmax.xlane.f32.xlu0 %v147
    %v185 = vpop.xlane.xlu0 %184
    %186 = vmax.xlane.f32.xlu0 %v150
    %v187 = vpop.xlane.xlu0 %186
    %188 = vmax.xlane.f32.xlu0 %v152
    %v189 = vpop.xlane.xlu0 %188
    %190 = vmax.xlane.f32.xlu0 %v155
    %v191 = vpop.xlane.xlu0 %190
    %192 = vmax.xlane.f32.xlu0 %v157
    %v193 = vpop.xlane.xlu0 %192
    %194 = vmax.xlane.f32.xlu0 %v160
    %v195 = vpop.xlane.xlu0 %194
    %196 = vmax.xlane.f32.xlu0 %v162
    %v197 = vpop.xlane.xlu0 %196
    %198 = vmax.xlane.f32.xlu0 %v165
    %v199 = vpop.xlane.xlu0 %198
    %200 = vmax.xlane.f32.xlu0 %v167
    %v201 = vpop.xlane.xlu0 %200
    %v202 = vsub.f32 %v140, %v179
    %v203 = vsub.f32 %v142, %v181
    %v204 = vsub.f32 %v145, %v183
    %v205 = vsub.f32 %v147, %v185
    %v206 = vsub.f32 %v150, %v187
    %v207 = vsub.f32 %v152, %v189
    %v208 = vsub.f32 %v155, %v191
    %v209 = vsub.f32 %v157, %v193
    %v210 = vsub.f32 %v160, %v195
    %v211 = vsub.f32 %v162, %v197
    %v212 = vsub.f32 %v165, %v199
    %v213 = vsub.f32 %v167, %v201
    %v214 = vmul.f32 %v202, 1.442695
    %v215 = vpow.pop %v214
    %v216 = vmul.f32 %v203, 1.442695
    %v217 = vpow.pop %v216
    %v218 = vmul.f32 %v204, 1.442695
    %v219 = vpow.pop %v218
    %v220 = vmul.f32 %v205, 1.442695
    %v221 = vpow.pop %v220
    %v222 = vmul.f32 %v206, 1.442695
    %v223 = vpow.pop %v222
    %v224 = vmul.f32 %v207, 1.442695
    %v225 = vpow.pop %v224
    %v226 = vmul.f32 %v208, 1.442695
    %v227 = vpow.pop %v226
    %v228 = vmul.f32 %v209, 1.442695
    %v229 = vpow.pop %v228
    %v230 = vmul.f32 %v210, 1.442695
    %v231 = vpow.pop %v230
    %v232 = vmul.f32 %v211, 1.442695
    %v233 = vpow.pop %v232
    %v234 = vmul.f32 %v212, 1.442695
    %v235 = vpow.pop %v234
    %v236 = vmul.f32 %v213, 1.442695
    %v237 = vpow.pop %v236
    %v238 = vsel %vm177, 1, 0
    %vm239 = vcmp.eq.s32.totalorder %v238, 1
    %v240 = vsel %vm239, %v215, 0.0
    %v241 = vsel %vm239, %v217, 0.0
    %v242 = vsel %vm239, %v219, 0.0
    %v243 = vsel %vm239, %v221, 0.0
    %v244 = vsel %vm239, %v223, 0.0
    %v245 = vsel %vm239, %v225, 0.0
    %v246 = vsel %vm239, %v227, 0.0
    %v247 = vsel %vm239, %v229, 0.0
    %v248 = vsel %vm239, %v231, 0.0
    %v249 = vsel %vm239, %v233, 0.0
    %v250 = vsel %vm239, %v235, 0.0
    %v251 = vsel %vm239, %v237, 0.0
    %252 = vadd.xlane.f32.xlu0 %v240
    %v253 = vpop.xlane.xlu0 %252
    %254 = vadd.xlane.f32.xlu0 %v241
    %v255 = vpop.xlane.xlu0 %254
    %256 = vadd.xlane.f32.xlu0 %v242
    %v257 = vpop.xlane.xlu0 %256
    %258 = vadd.xlane.f32.xlu0 %v243
    %v259 = vpop.xlane.xlu0 %258
    %260 = vadd.xlane.f32.xlu0 %v244
    %v261 = vpop.xlane.xlu0 %260
    %262 = vadd.xlane.f32.xlu0 %v245
    %v263 = vpop.xlane.xlu0 %262
    %264 = vadd.xlane.f32.xlu0 %v246
    %v265 = vpop.xlane.xlu0 %264
    %266 = vadd.xlane.f32.xlu0 %v247
    %v267 = vpop.xlane.xlu0 %266
    %268 = vadd.xlane.f32.xlu0 %v248
    %v269 = vpop.xlane.xlu0 %268
    %270 = vadd.xlane.f32.xlu0 %v249
    %v271 = vpop.xlane.xlu0 %270
    %272 = vadd.xlane.f32.xlu0 %v250
    %v273 = vpop.xlane.xlu0 %272
    %274 = vadd.xlane.f32.xlu0 %v251
    %v275 = vpop.xlane.xlu0 %274
    %v276 = vrcp.pop %v253
    %v277 = vrcp.pop %v255
    %v278 = vrcp.pop %v257
    %v279 = vrcp.pop %v259
    %v280 = vrcp.pop %v261
    %v281 = vrcp.pop %v263
    %v282 = vrcp.pop %v265
    %v283 = vrcp.pop %v267
    %v284 = vrcp.pop %v269
    %v285 = vrcp.pop %v271
    %v286 = vrcp.pop %v273
    %v287 = vrcp.pop %v275
    %v288 = vmul.f32 %v276, 0.083333336
    %v289 = vmul.f32 %v277, 0.083333336
    %v290 = vmul.f32 %v278, 0.083333336
    %v291 = vmul.f32 %v279, 0.083333336
    %v292 = vmul.f32 %v280, 0.083333336
    %v293 = vmul.f32 %v281, 0.083333336
    %v294 = vmul.f32 %v282, 0.083333336
    %v295 = vmul.f32 %v283, 0.083333336
    %v296 = vmul.f32 %v284, 0.083333336
    %v297 = vmul.f32 %v285, 0.083333336
    %v298 = vmul.f32 %v286, 0.083333336
    %v299 = vmul.f32 %v287, 0.083333336
    %v300 = vmul.f32 %v240, %v288
    %v301 = vmul.f32 %v241, %v289
    %v302 = vmul.f32 %v242, %v290
    %v303 = vmul.f32 %v243, %v291
    %v304 = vmul.f32 %v244, %v292
    %v305 = vmul.f32 %v245, %v293
    %v306 = vmul.f32 %v246, %v294
    %v307 = vmul.f32 %v247, %v295
    %v308 = vmul.f32 %v248, %v296
    %v309 = vmul.f32 %v249, %v297
    %v310 = vmul.f32 %v250, %v298
    %v311 = vmul.f32 %v251, %v299
    %v312 = vld [vmem:[#allocation9] sm:$0xff]
    %v313 = vadd.f32 %v300, %v301
    %v314 = vadd.f32 %v313, %v302
    %v315 = vadd.f32 %v314, %v303
    %v316 = vadd.f32 %v315, %v304
    %v317 = vadd.f32 %v316, %v305
    %v318 = vadd.f32 %v317, %v306
    %v319 = vadd.f32 %v318, %v307
    %v320 = vadd.f32 %v319, %v308
    %v321 = vadd.f32 %v320, %v309
    %v322 = vadd.f32 %v321, %v310
    %v323 = vadd.f32 %v322, %v311
    %v324 = vadd.f32 %v312, %v323
    %325 = vst [vmem:[#allocation9] sm:$0xff] %v324
    // Predicated region
    $region30: #{tpu_custom_call.1} parent=1 // pred_check
      _
    $region31: #{tpu_custom_call.1} parent=1 // pred_check_branch
      %327 = sbr.rel (0) target = $region33
    $region32: #{tpu_custom_call.1} parent=1 // pred_region
      %329 = vsyncadd [#allocation4], 0
      %s331 = sshll.u32 [#allocation8], 4
      %s332 = int_to_ptr.vmem [resolvable:$true] %s331
      %s333 = sshll.u32 %s3, 4
      %s334 = int_to_ptr.hbm [resolvable:$true] %s333
      %336 = dma.vmem_to_hbm [thread:$0]  %s332, 128, %s334, [#allocation4]
    $region33: #{tpu_custom_call.1} parent=1 // pred_fallthru
      _
    // Predicated region
    $region34: #{tpu_custom_call.1} parent=1 // pred_check
      _
    $region35: #{tpu_custom_call.1} parent=1 // pred_check_branch
      %338 = sbr.rel (0) target = $region37
    $region36: #{tpu_custom_call.1} parent=1 // pred_region
      %340 = vsyncadd [#allocation10], 0
      %s342 = sshll.u32 [#allocation9], 4
      %s343 = int_to_ptr.vmem [resolvable:$true] %s342
      %s344 = sshll.u32 %s4, 4
      %s345 = int_to_ptr.hbm [resolvable:$true] %s344
      %347 = dma.vmem_to_hbm [thread:$0]  %s343, 128, %s345, [#allocation10]
    $region37: #{tpu_custom_call.1} parent=1 // pred_fallthru
      _
    // Predicated region
    $region38: #{tpu_custom_call.1} parent=1 // pred_check
      _
    $region39: #{tpu_custom_call.1} parent=1 // pred_check_branch
      %349 = sbr.rel (0) target = $region41
    $region40: #{tpu_custom_call.1} parent=1 // pred_region
      %351 = dma.done [#allocation4], 128
    $region41: #{tpu_custom_call.1} parent=1 // pred_fallthru
      _
    // Predicated region
    $region42: #{tpu_custom_call.1} parent=1 // pred_check
      _
    $region43: #{tpu_custom_call.1} parent=1 // pred_check_branch
      %353 = sbr.rel (0) target = $region45
    $region44: #{tpu_custom_call.1} parent=1 // pred_region
      %355 = dma.done [#allocation10], 128
    $region45: #{tpu_custom_call.1} parent=1 // pred_fallthru
      _
    %356 = vsyncpa [#allocation3], 1
    %357 = vsyncpa [#allocation6], 1
    %358 = vsyncpa [#allocation4], 1
    %359 = vsyncpa [#allocation10], 1

</llo_original>
